<compile_context>
chip_gen: v7x
topology: tpu7x:2x2x1
jax: 0.10.0
libtpu: 0.0.40
codegen_flags: <defaults>
</compile_context>

<pallas_src>
import functools

import numpy as np
import jax
import jax.numpy as jnp
from jax.experimental import pallas as pl
from jax.experimental.pallas import tpu as pltpu


def _round_up(x, mult):
    return ((x + mult - 1) // mult) * mult


# ----------------------------------------------------------------------------
# Hardware detection (defensive; only affects performance decisions)
# ----------------------------------------------------------------------------
def _tpu_params():
    """Returns (vmem_budget_bytes, tile_r_cap, n_tensorcores_per_chip)."""
    kind = ""
    try:
        kind = jax.devices()[0].device_kind.lower()
    except Exception:
        pass
    vmem_phys = None
    try:
        info = pltpu.get_tpu_info()
        vmem_phys = int(getattr(info, "vmem_capacity_bytes", 0)) or None
    except Exception:
        pass

    if "v7" in kind:
        # 64 MiB per TensorCore, 2 TCs per chip: leave Mosaic scratch headroom.
        budget, tile_r_cap, cores = 28 << 20, 2048, 2
    elif ("v6" in kind or "v5e" in kind or "v5 lite" in kind
          or "v5lite" in kind):
        budget, tile_r_cap, cores = 64 << 20, 8192, 1
    elif "v5p" in kind or "v4" in kind:
        budget, tile_r_cap, cores = 48 << 20, 4096, 2
    else:
        budget, tile_r_cap, cores = 24 << 20, 2048, 1
    if vmem_phys is not None:
        budget = min(budget, max(8 << 20, vmem_phys // 2))
    return budget, tile_r_cap, cores


# ----------------------------------------------------------------------------
# Input grouping: pre-combine adjacent small inputs on the XLA side
# ----------------------------------------------------------------------------
def _plan_groups(ms, n_rules):
    n = len(ms)
    if n <= 2:
        return [[i] for i in range(n)]
    cap = max(max(ms), min(256, max(1, n_rules // 4)))
    groups, cur, size = [], [0], ms[0]
    for i in range(1, n):
        if size * ms[i] <= cap:
            cur.append(i)
            size *= ms[i]
        else:
            groups.append(cur)
            cur, size = [i], ms[i]
    groups.append(cur)
    if len(groups) == 1:          # never reduce the kernel to a plain copy
        groups = [cur[:-1], [cur[-1]]]
    return groups


# ----------------------------------------------------------------------------
# Constant one-hot selection matrices (cached across calls)
# ----------------------------------------------------------------------------
@functools.lru_cache(maxsize=None)
def _selection_matrices(dot_specs, n_rules, n_rules_pad):
    """dot_specs: tuple of (m, stride, dtype_name) for matmul-mode groups."""
    r = np.arange(n_rules)
    sels = []
    for m, stride, dt in dot_specs:
        idx = (r // stride) % m
        sel = np.zeros((m, n_rules_pad), dtype=np.float32)
        sel[idx, r] = 1.0                  # padded columns (r>=n_rules) stay 0
        sels.append(jnp.asarray(sel, dtype=jnp.dtype(dt)))
    return tuple(sels)


# ----------------------------------------------------------------------------
# Tiling / VMEM sizing
# ----------------------------------------------------------------------------
def _choose_tiles(rows, group_ms, x_itemsizes, sel_itemsizes, out_itemsize,
                  n_rules, budget, tile_r_cap, n_cores):
    n_rules_pad = _round_up(n_rules, 128)
    q = n_rules_pad // 128
    n_g = len(group_ms)

    def sel_bytes(tr):
        return 2 * sum(m * tr * si for m, si in zip(group_ms, sel_itemsizes))

    def per_row(tr):
        # double-buffered out block + (n_g + 1) live f32 intermediates
        # (Python-unrolled loop; conservative) + double-buffered x blocks.
        return (2 * tr * out_itemsize + (n_g + 1) * tr * 4
                + 2 * sum(m * xi for m, xi in zip(group_ms, x_itemsizes)))

    avail_total = int(budget * 0.75)

    # tile_r: largest multiple of 128 dividing n_rules_pad that fits the
    # per-generation cap and still leaves room for a >=64-row block.
    max_d = max(1, min(q, tile_r_cap // 128))
    cand = [d for d in range(max_d, 0, -1) if q % d == 0]
    tile_r = 128 * cand[-1]
    for d in cand:
        tr = 128 * d
        if avail_total - sel_bytes(tr) >= per_row(tr) * 64:
            tile_r = tr
            break
    n_rule_tiles = n_rules_pad // tile_r

    avail = avail_total - sel_bytes(tile_r)
    max_block = max(8, avail // per_row(tile_r)) if avail > 0 else 8
    max_block = int(min(max_block, 8192))

    # ---- row blocking: avoid post-kernel slice copies whenever possible ----
    if rows <= max_block:
        block_rows = rows                       # full-dim block, no padding
        if (n_cores >= 2 and n_rule_tiles == 1 and rows % 16 == 0
                and rows >= 16):
            block_rows = rows // 2              # give the 2nd TensorCore work
        return block_rows, tile_r, n_rules_pad, rows

    max_block8 = max(8, (max_block // 8) * 8)
    needs_col_slice = n_rules_pad != n_rules
    if rows % 8 == 0 and not needs_col_slice:
        # Largest multiple-of-8 divisor of rows that fits the VMEM budget.
        R = rows // 8
        e = min(R, max_block8 // 8)
        while R % e:
            e -= 1
        d_div = 8 * e
        # Cost model (bytes-equivalent): extra grid-step overhead vs padded
        # writes + the post-kernel slice copy that row padding would force.
        step_bytes = 450_000                    # ~0.35 us at ~1.3 TB/s
        padded_rows = _round_up(rows, max_block8)
        cost_div = (rows // d_div) * n_rule_tiles * step_bytes
        cost_pad = ((padded_rows // max_block8) * n_rule_tiles * step_bytes
                    + (padded_rows - rows) * n_rules_pad * out_itemsize
                    + 2 * rows * n_rules * out_itemsize)
        if cost_div <= cost_pad:
            return d_div, tile_r, n_rules_pad, rows
        return max_block8, tile_r, n_rules_pad, padded_rows

    block_rows = max_block8
    return block_rows, tile_r, n_rules_pad, _round_up(rows, block_rows)


# ----------------------------------------------------------------------------
# Kernel body
# ----------------------------------------------------------------------------
def _make_rule_kernel(modes, group_ms, strides, tile_r, rule_axis):
    n = len(modes)

    def kernel(*refs):
        # refs = (x_0..x_{n-1}, sel_0..sel_{k-1} [dot groups only], out)
        out_ref = refs[-1]
        sel_refs = refs[n:-1]
        j = pl.program_id(rule_axis)
        acc = None
        si = 0
        for i in range(n):
            x = refs[i][...]                              # (block_rows, m_i)
            if modes[i] == "dot":
                sel = sel_refs[si][...]                   # (m_i, tile_r)
                si += 1
                # One-hot matmul == gather along the rule (lane) axis.
                # f32 accumulation; exact because sel is exactly 0/1.
                expanded = jnp.dot(x, sel,
                                   preferred_element_type=jnp.float32)
            else:
                # Member index of this group is constant inside the rule
                # tile: pick that single column and broadcast over the tile.
                k = (j * tile_r // strides[i]) % group_ms[i]
                onehot = (jax.lax.broadcasted_iota(
                    jnp.int32, (1, group_ms[i]), 1) == k).astype(jnp.float32)
                expanded = jnp.sum(x.astype(jnp.float32) * onehot,
                                   axis=1, keepdims=True)  # (block_rows, 1)
            acc = expanded if acc is None else acc * expanded
        out_ref[...] = acc.astype(out_ref.dtype)

    return kernel


# ----------------------------------------------------------------------------
# Public wrapper
# ----------------------------------------------------------------------------
def rule_layer(xs, out_dtype=None, tile_r_cap=None):
    """Pallas implementation of RuleLayer.forward for a list/tuple of arrays.

    Pass out_dtype=jnp.bfloat16 when downstream tolerates it: the output
    write is the HBM roofline, so bf16 roughly halves wall time (the product
    is still accumulated in f32 before the downcast).  `tile_r_cap` is a
    testing/tuning override for the rule-axis tile cap.
    """
    if len(xs) == 0:
        return xs
    assert all(a.shape[0] == b.shape[0] for a, b in zip(xs[:-1], xs[1:])), (
        "All inputs should have the same batch size.")
    dim = xs[0].ndim
    if dim == 2:
        main_shape = xs[0].shape[:1]
    elif dim == 3:
        main_shape = xs[0].shape[:2]
    else:
        raise TypeError("Data dimension should be either 2 or 3.")

    rows = int(np.prod(main_shape))
    flat = [x.reshape((rows, -1)) for x in xs]
    ms = tuple(int(f.shape[1]) for f in flat)
    n_rules = int(np.prod(ms, dtype=np.int64))
    if out_dtype is None:
        out_dtype = jnp.result_type(*[f.dtype for f in flat])
    out_dtype = jnp.dtype(out_dtype)

    # Pre-combine adjacent small inputs (exact w.r.t. the broadcast product;
    # preserves the row-major rule index because groups stay contiguous).
    groups = _plan_groups(ms, n_rules)
    g_x, g_ms = [], []
    for idxs in groups:
        g = flat[idxs[0]]
        for i in idxs[1:]:
            g = (g[:, :, None] * flat[i][:, None, :]).reshape(rows, -1)
        g_x.append(g)
        g_ms.append(int(np.prod([ms[i] for i in idxs], dtype=np.int64)))
    n_g = len(g_x)
    strides = tuple(int(np.prod(g_ms[i + 1:], dtype=np.int64))
                    for i in range(n_g))
    x_itemsizes = tuple(jnp.dtype(g.dtype).itemsize for g in g_x)
    # sel matrices match bf16 inputs (exact 0/1 values), otherwise f32.
    sel_dtypes = tuple(
        "bfloat16" if jnp.dtype(g.dtype) == jnp.bfloat16 else "float32"
        for g in g_x)
    sel_itemsizes = tuple(2 if d == "bfloat16" else 4 for d in sel_dtypes)

    budget, hw_tile_cap, n_cores = _tpu_params()
    if tile_r_cap is not None:
        hw_tile_cap = int(tile_r_cap)
    block_rows, tile_r, n_rules_pad, padded_rows = _choose_tiles(
        rows, tuple(g_ms), x_itemsizes, sel_itemsizes, out_dtype.itemsize,
        n_rules, budget, hw_tile_cap, n_cores)

    if padded_rows != rows:
        g_x = [jnp.pad(g, ((0, padded_rows - rows), (0, 0))) for g in g_x]

    n_rule_tiles = n_rules_pad // tile_r
    n_row_tiles = padded_rows // block_rows

    # Expansion mode per group: broadcast when the member index is constant
    # within a rule tile, otherwise a one-hot matmul.
    modes = tuple(
        "bcast" if (strides[i] >= tile_r and strides[i] % tile_r == 0)
        else "dot" for i in range(n_g))
    dot_specs = tuple((g_ms[i], strides[i], sel_dtypes[i])
                      for i in range(n_g) if modes[i] == "dot")
    sels = _selection_matrices(dot_specs, n_rules, n_rules_pad)

    # Rule axis leads when it has >=2 tiles: megacore-shardable on 2-TC chips
    # and the rule-indexed sel blocks are only re-fetched when it changes.
    if n_rule_tiles > 1:
        grid = (n_rule_tiles, n_row_tiles)
        rule_axis = 0
        x_map = lambda j, b: (b, 0)
        s_map = lambda j, b: (0, j)
        o_map = lambda j, b: (b, j)
    else:
        grid = (n_row_tiles, n_rule_tiles)
        rule_axis = 1
        x_map = lambda b, j: (b, 0)
        s_map = lambda b, j: (0, j)
        o_map = lambda b, j: (b, j)

    in_specs = ([pl.BlockSpec((block_rows, m), x_map) for m in g_ms]
                + [pl.BlockSpec((m, tile_r), s_map) for m, _, _ in dot_specs])
    out_specs = pl.BlockSpec((block_rows, tile_r), o_map)

    cost = pl.CostEstimate(
        flops=int(2 * padded_rows * n_rules_pad * sum(g_ms)),
        transcendentals=0,
        bytes_accessed=int(
            padded_rows * n_rules_pad * out_dtype.itemsize
            + sum(padded_rows * m * isz for m, isz in zip(g_ms, x_itemsizes))
            + sum(m * n_rules_pad * (2 if dt == "bfloat16" else 4)
                  for m, _, dt in dot_specs)))

    out = pl.pallas_call(
        _make_rule_kernel(modes, tuple(g_ms), strides, tile_r, rule_axis),
        out_shape=jax.ShapeDtypeStruct((padded_rows, n_rules_pad), out_dtype),
        grid=grid,
        in_specs=in_specs,
        out_specs=out_specs,
        compiler_params=pltpu.CompilerParams(
            dimension_semantics=("parallel", "parallel"),
            vmem_limit_bytes=int(budget)),
        cost_estimate=cost,
    )(*g_x, *sels)

    if padded_rows != rows or n_rules_pad != n_rules:
        out = out[:rows, :n_rules]
    return out.reshape(*main_shape, n_rules)


def rule_layer_ref(xs):
    """Pure-JAX replication of the PyTorch semantics (for verification)."""
    n = len(xs)
    dim = xs[0].ndim
    main_shape = xs[0].shape[:1] if dim == 2 else xs[0].shape[:2]
    views = []
    for idx, f in enumerate(xs):
        shape = list(main_shape) + [1] * n
        shape[len(main_shape) + idx] = -1
        views.append(f.reshape(shape))
    out = views[0]
    for v in views[1:]:
        out = out * v
    return out.reshape(*main_shape, -1)


if __name__ == "__main__":
    key = jax.random.PRNGKey(0)
    ks = jax.random.split(key, 12)

    # 1) 2-D inputs: (batch, m_i), members 4/4/8 -> 128 rules (exercises
    #    input pre-combining and the exactly-128-lane no-slice path).
    batch = 16
    x0 = jax.random.uniform(ks[0], (batch, 4), dtype=jnp.float32)
    x1 = jax.random.uniform(ks[1], (batch, 4), dtype=jnp.float32)
    x2 = jax.random.uniform(ks[2], (batch, 8), dtype=jnp.float32)
    xs = (x0, x1, x2)
    out = jax.block_until_ready(rule_layer(xs))
    ref = rule_layer_ref(xs)
    assert out.shape == (batch, 128), out.shape
    np.testing.assert_allclose(np.asarray(out), np.asarray(ref),
                               rtol=1e-6, atol=1e-6)

    # 2) 3-D inputs: (batch, seq, m_i), members 3/5 -> 15 rules (exercises
    #    the lane-padding + column-slice path).
    y0 = jax.random.uniform(ks[3], (2, 8, 3), dtype=jnp.float32)
    y1 = jax.random.uniform(ks[4], (2, 8, 5), dtype=jnp.float32)
    ys = (y0, y1)
    out3 = jax.block_until_ready(rule_layer(ys))
    ref3 = rule_layer_ref(ys)
    assert out3.shape == (2, 8, 15), out3.shape
    np.testing.assert_allclose(np.asarray(out3), np.asarray(ref3),
                               rtol=1e-6, atol=1e-6)

    # 3) Four inputs, odd batch: 3/4/5/6 -> 360 rules (exercises grouping of
    #    three inputs and a whole-rows block with rows not a multiple of 8).
    z = [jax.random.uniform(ks[5 + i], (10, m), dtype=jnp.float32)
         for i, m in enumerate((3, 4, 5, 6))]
    out4 = jax.block_until_ready(rule_layer(z))
    ref4 = rule_layer_ref(z)
    assert out4.shape == (10, 360), out4.shape
    np.testing.assert_allclose(np.asarray(out4), np.asarray(ref4),
                               rtol=1e-6, atol=1e-6)

    # 4) Multi rule-tile path with a forced small tile cap: members 5/128 ->
    #    640 rules, tile_r=128 (exercises the rules-leading grid and the
    #    per-row broadcast mode for the leading input on every chip).
    w0 = jax.random.uniform(ks[9], (8, 5), dtype=jnp.float32)
    w1 = jax.random.uniform(ks[10], (8, 128), dtype=jnp.float32)
    out5 = jax.block_until_ready(rule_layer((w0, w1), tile_r_cap=128))
    ref5 = rule_layer_ref((w0, w1))
    assert out5.shape == (8, 640), out5.shape
    np.testing.assert_allclose(np.asarray(out5), np.asarray(ref5),
                               rtol=1e-6, atol=1e-6)

    print("KERNEL_OK")
</pallas_src>

<mosaic_0001>
module attributes {stable_mosaic.version = 11 : i64} {
  func.func @kernel(%arg0: i32, %arg1: i32, %arg2: memref<16x16xf32, #tpu.memory_space<vmem>>, %arg3: memref<16x8xf32, #tpu.memory_space<vmem>>, %arg4: memref<16x128xf32, #tpu.memory_space<vmem>>, %arg5: memref<8x128xf32, #tpu.memory_space<vmem>>, %arg6: memref<16x128xf32, #tpu.memory_space<vmem>>) attributes {dimension_semantics = [#tpu.dimension_semantics<parallel>, #tpu.dimension_semantics<parallel>], iteration_bounds = array<i64: 1, 1>, scalar_prefetch = 0 : i64, scratch_operands = 0 : i64, tpu.core_type = #tpu.core_type<tc>, window_params = [{transform_indices = @transform_0, window_bounds = array<i64: 16, 16>}, {transform_indices = @transform_1, window_bounds = array<i64: 16, 8>}, {transform_indices = @transform_2, window_bounds = array<i64: 16, 128>}, {transform_indices = @transform_3, window_bounds = array<i64: 8, 128>}, {transform_indices = @transform_4, window_bounds = array<i64: 16, 128>}]} {
    %c0 = arith.constant 0 : index
    %c0_0 = arith.constant 0 : index
    %0 = vector.load %arg2[%c0, %c0_0] : memref<16x16xf32, #tpu.memory_space<vmem>>, vector<16x16xf32>
    %c0_1 = arith.constant 0 : index
    %c0_2 = arith.constant 0 : index
    %1 = vector.load %arg4[%c0_1, %c0_2] : memref<16x128xf32, #tpu.memory_space<vmem>>, vector<16x128xf32>
    %cst = arith.constant dense<0.000000e+00> : vector<16x128xf32>
    %2 = tpu.matmul %0, %1, %cst {dimension_numbers = #tpu.dot_dimension_numbers<[1], [0], [0], [1], [0, 0, 1, 1], [], []>} : vector<16x16xf32>, vector<16x128xf32>, vector<16x128xf32> -> vector<16x128xf32>
    %c0_3 = arith.constant 0 : index
    %c0_4 = arith.constant 0 : index
    %3 = vector.load %arg3[%c0_3, %c0_4] : memref<16x8xf32, #tpu.memory_space<vmem>>, vector<16x8xf32>
    %c0_5 = arith.constant 0 : index
    %c0_6 = arith.constant 0 : index
    %4 = vector.load %arg5[%c0_5, %c0_6] : memref<8x128xf32, #tpu.memory_space<vmem>>, vector<8x128xf32>
    %cst_7 = arith.constant dense<0.000000e+00> : vector<16x128xf32>
    %5 = tpu.matmul %3, %4, %cst_7 {dimension_numbers = #tpu.dot_dimension_numbers<[1], [0], [0], [1], [0, 0, 1, 1], [], []>} : vector<16x8xf32>, vector<8x128xf32>, vector<16x128xf32> -> vector<16x128xf32>
    %6 = arith.mulf %2, %5 : vector<16x128xf32>
    %c0_8 = arith.constant 0 : index
    %c0_9 = arith.constant 0 : index
    %7 = vector.load %arg6[%c0_8, %c0_9] : memref<16x128xf32, #tpu.memory_space<vmem>>, vector<16x128xf32>
    tpu.vector_store %arg6[%c0_8, %c0_9], %6 {strides = array<i32>} : memref<16x128xf32, #tpu.memory_space<vmem>>, vector<16x128xf32>,
    return
  }
  func.func @transform_0(%arg0: i32, %arg1: i32) -> (i32, i32) {
    %c0_i32 = arith.constant 0 : i32
    %c0_i32_0 = arith.constant 0 : i32
    return %arg0, %c0_i32 : i32, i32
  }
  func.func @transform_1(%arg0: i32, %arg1: i32) -> (i32, i32) {
    %c0_i32 = arith.constant 0 : i32
    %c0_i32_0 = arith.constant 0 : i32
    return %arg0, %c0_i32 : i32, i32
  }
  func.func @transform_2(%arg0: i32, %arg1: i32) -> (i32, i32) {
    %c0_i32 = arith.constant 0 : i32
    %c0_i32_0 = arith.constant 0 : i32
    return %c0_i32, %arg1 : i32, i32
  }
  func.func @transform_3(%arg0: i32, %arg1: i32) -> (i32, i32) {
    %c0_i32 = arith.constant 0 : i32
    %c0_i32_0 = arith.constant 0 : i32
    return %c0_i32, %arg1 : i32, i32
  }
  func.func @transform_4(%arg0: i32, %arg1: i32) -> (i32, i32) {
    %c0_i32 = arith.constant 0 : i32
    return %arg0, %arg1 : i32, i32
  }
}

</mosaic_0001>

<llo_original>
// kernel: tpu_custom_call.1
$region0: #{tpu_custom_call.1}
  #allocation0 [shape = 'u32[]', space=smem, size = 0x4, offset = 0x4, fixed_abs, tag = 'smem constant byte address 0x4 - core index']
  #allocation1 [shape = 'u32[144,128]{1,0:T(1,128)}', space=vmem, size = 0x12000, scoped, tag = 'internal scratch']
  %s0 = inlined_call_operand.vmem [shape: f32[16,16], index: 0, kind: input, shape index: {}]
  %s1 = inlined_call_operand.vmem [shape: f32[16,8], index: 1, kind: input, shape index: {}]
  %s2 = inlined_call_operand.hbm [shape: f32[16,128], index: 2, kind: input, shape index: {}]
  %s3 = inlined_call_operand.vmem [shape: f32[8,128], index: 3, kind: input, shape index: {}]
  %s4 = inlined_call_operand.hbm [shape: f32[16,128], index: 4, kind: output, shape index: {}]
  %s5 = sld [smem:[#allocation0]]
  $region30: #{tpu_custom_call.1} parent=0
    _
  %s7 = ssub.s32 1, %s5
  %s8 = scalar_select 0, %s7, %s5
  $region1: #{tpu_custom_call.1} parent=0
    #allocation2 [shape = 'u8[8192]{0}', space=vmem, size = 0x2000, scoped, tag = 'input window, operand 2, single buffered']
    #allocation3 [shape = 's32[1]{0}', space=sflag, size = 0x4, scoped, tag = 'scoped memory for tpu_custom_call.1']
    #allocation4 [shape = 's32[1]{0}', space=sflag, size = 0x4, scoped, tag = 'scoped memory for tpu_custom_call.1']
    #allocation5 [shape = 'u8[8192]{0}', space=vmem, size = 0x2000, scoped, tag = 'output window, operand 0, single buffered']
    %9 = vsyncpa [#allocation3], 0
    %10 = vsyncpa [#allocation4], 0
    // Predicated region
    $region2: #{tpu_custom_call.1} parent=1 // pred_check
      _
    $region3: #{tpu_custom_call.1} parent=1 // pred_check_branch
      %12 = sbr.rel (0) target = $region5
    $region4: #{tpu_custom_call.1} parent=1 // pred_region
      _
    $region5: #{tpu_custom_call.1} parent=1 // pred_fallthru
      _
    // Predicated region
    $region6: #{tpu_custom_call.1} parent=1 // pred_check
      _
    $region7: #{tpu_custom_call.1} parent=1 // pred_check_branch
      %14 = sbr.rel (0) target = $region9
    $region8: #{tpu_custom_call.1} parent=1 // pred_region
      _
    $region9: #{tpu_custom_call.1} parent=1 // pred_fallthru
      _
    // Predicated region
    $region10: #{tpu_custom_call.1} parent=1 // pred_check
      _
    $region11: #{tpu_custom_call.1} parent=1 // pred_check_branch
      %16 = sbr.rel (0) target = $region13
    $region12: #{tpu_custom_call.1} parent=1 // pred_region
      %s18 = ssub.s32 256, 256
      %19 = vsyncadd [#allocation3], %s18
      %s20 = sshll.u32 [#allocation2], 4
      %s21 = int_to_ptr.vmem [resolvable:$true] %s20
      %26 = dma.hbm_to_vmem [thread:$0]  %s2, 256, %s21, [#allocation3], 128, 128, 8
    $region13: #{tpu_custom_call.1} parent=1 // pred_fallthru
      _
    // Predicated region
    $region14: #{tpu_custom_call.1} parent=1 // pred_check
      _
    $region15: #{tpu_custom_call.1} parent=1 // pred_check_branch
      %28 = sbr.rel (0) target = $region17
    $region16: #{tpu_custom_call.1} parent=1 // pred_region
      _
    $region17: #{tpu_custom_call.1} parent=1 // pred_fallthru
      _
    // Predicated region
    $region18: #{tpu_custom_call.1} parent=1 // pred_check
      _
    $region19: #{tpu_custom_call.1} parent=1 // pred_check_branch
      %30 = sbr.rel (0) target = $region21
    $region20: #{tpu_custom_call.1} parent=1 // pred_region
      %31 = dma.done [#allocation3], 256
    $region21: #{tpu_custom_call.1} parent=1 // pred_fallthru
      _
    %v32 = vld [vmem:[%s0] sm:$0xff]
    %v33 = vld [vmem:[%s0 + $0x8] sm:$0xff]
    %v34 = vld [vmem:[#allocation2] sm:$0xff]
    %v35 = vld [vmem:[#allocation2 + $0x8] sm:$0xff]
    %vm36 = vcmask 130048
    %v38 = vsel %vm36, %v32, 0
    %v41 = vsel %vm36, %v33, 0
    %43 = vmatprep.subr.mxu0 0.0
    %44 = vmatpush1.msra.mxu0 %v34
    %45 = vmatprep.subr.mxu0 0.0
    %46 = vmatpush1.msra.mxu0 %v35
    %47 = vmatprep.subr.mxu0 0.0
    %48 = vmatpush1.msra.mxu0 0.0
    %49 = vmatprep.subr.mxu0 0.0
    %50 = vmatpush1.msra.mxu0 0.0
    %51 = vmatprep.subr.mxu0 0.0
    %52 = vmatpush1.msra.mxu0 0.0
    %53 = vmatprep.subr.mxu0 0.0
    %54 = vmatpush1.msra.mxu0 0.0
    %55 = vmatprep.subr.mxu0 0.0
    %56 = vmatpush1.msra.mxu0 0.0
    %57 = vmatprep.subr.mxu0 0.0
    %58 = vmatpush1.msra.mxu0 0.0
    %59 = vmatprep.subr.mxu0 0.0
    %60 = vmatpush1.msra.mxu0 0.0
    %61 = vmatprep.subr.mxu0 0.0
    %62 = vmatpush1.msra.mxu0 0.0
    %63 = vmatprep.subr.mxu0 0.0
    %64 = vmatpush1.msra.mxu0 0.0
    %65 = vmatprep.subr.mxu0 0.0
    %66 = vmatpush1.msra.mxu0 0.0
    %67 = vmatprep.subr.mxu0 0.0
    %68 = vmatpush1.msra.mxu0 0.0
    %69 = vmatprep.subr.mxu0 0.0
    %70 = vmatpush1.msra.mxu0 0.0
    %71 = vmatprep.subr.mxu0 0.0
    %72 = vmatpush1.msra.mxu0 0.0
    %73 = vmatprep.subr.mxu0 0.0
    %74 = vmatpush1.msra.mxu0 0.0
    %75 = vmatprep.subr.mxu0 0.0
    %76 = vmatpush1.msra.mxu0 0.0
    %77 = vmatprep.subr.mxu0 0.0
    %78 = vmatpush1.msra.mxu0 0.0
    %79 = vmatprep.subr.mxu0 0.0
    %80 = vmatpush1.msra.mxu0 0.0
    %81 = vmatprep.subr.mxu0 0.0
    %82 = vmatpush1.msra.mxu0 0.0
    %83 = vmatprep.subr.mxu0 0.0
    %84 = vmatpush1.msra.mxu0 0.0
    %85 = vmatprep.subr.mxu0 0.0
    %86 = vmatpush1.msra.mxu0 0.0
    %87 = vmatprep.subr.mxu0 0.0
    %88 = vmatpush1.msra.mxu0 0.0
    %89 = vmatprep.subr.mxu0 0.0
    %90 = vmatpush1.msra.mxu0 0.0
    %91 = vmatprep.subr.mxu0 0.0
    %92 = vmatpush1.msra.mxu0 0.0
    %93 = vmatprep.subr.mxu0 0.0
    %94 = vmatpush1.msra.mxu0 0.0
    %95 = vmatprep.subr.mxu0 0.0
    %96 = vmatpush1.msra.mxu0 0.0
    %97 = vmatprep.subr.mxu0 0.0
    %98 = vmatpush1.msra.mxu0 0.0
    %99 = vmatprep.subr.mxu0 0.0
    %100 = vmatpush1.msra.mxu0 0.0
    %101 = vmatprep.subr.mxu0 0.0
    %102 = vmatpush1.msra.mxu0 0.0
    %103 = vmatprep.subr.mxu0 0.0
    %104 = vmatpush1.msra.mxu0 0.0
    %105 = vmatprep.subr.mxu0 0.0
    %106 = vmatpush1.msra.mxu0 0.0
    %107 = vmatprep.mubr.f32.mxu0 0.0
    %108 = vmatmul.mubr.f32.gmra.mrb[0].mxu0 %v38
    %v109 = vpop.f32.mrb[0].mxu0
    %v110 = vadd.f32 0.0, %v109
    %v111 = vpop.f32.mrb[0].mxu0
    %112 = vmatprep.mubr.f32.mxu0 0.0
    %113 = vmatmul.mubr.f32.gmra.mrb[0].mxu0 %v41
    %v114 = vpop.f32.mrb[0].mxu0
    %v115 = vadd.f32 0.0, %v114
    %v116 = vpop.f32.mrb[0].mxu0
    %117 = vdwg.mxu0
    %v118 = vld [vmem:[%s1] sm:$0xff]
    %v119 = vld [vmem:[%s1 + $0x8] sm:$0xff]
    %v120 = vld [vmem:[%s3] sm:$0xff]
    %vm121 = vcmask 64512
    %v123 = vsel %vm121, %v118, 0
    %v126 = vsel %vm121, %v119, 0
    %128 = vmatprep.subr.mxu0 0.0
    %129 = vmatpush1.msra.mxu0 %v120
    %130 = vmatprep.subr.mxu0 0.0
    %131 = vmatpush1.msra.mxu0 0.0
    %132 = vmatprep.subr.mxu0 0.0
    %133 = vmatpush1.msra.mxu0 0.0
    %134 = vmatprep.subr.mxu0 0.0
    %135 = vmatpush1.msra.mxu0 0.0
    %136 = vmatprep.subr.mxu0 0.0
    %137 = vmatpush1.msra.mxu0 0.0
    %138 = vmatprep.subr.mxu0 0.0
    %139 = vmatpush1.msra.mxu0 0.0
    %140 = vmatprep.subr.mxu0 0.0
    %141 = vmatpush1.msra.mxu0 0.0
    %142 = vmatprep.subr.mxu0 0.0
    %143 = vmatpush1.msra.mxu0 0.0
    %144 = vmatprep.subr.mxu0 0.0
    %145 = vmatpush1.msra.mxu0 0.0
    %146 = vmatprep.subr.mxu0 0.0
    %147 = vmatpush1.msra.mxu0 0.0
    %148 = vmatprep.subr.mxu0 0.0
    %149 = vmatpush1.msra.mxu0 0.0
    %150 = vmatprep.subr.mxu0 0.0
    %151 = vmatpush1.msra.mxu0 0.0
    %152 = vmatprep.subr.mxu0 0.0
    %153 = vmatpush1.msra.mxu0 0.0
    %154 = vmatprep.subr.mxu0 0.0
    %155 = vmatpush1.msra.mxu0 0.0
    %156 = vmatprep.subr.mxu0 0.0
    %157 = vmatpush1.msra.mxu0 0.0
    %158 = vmatprep.subr.mxu0 0.0
    %159 = vmatpush1.msra.mxu0 0.0
    %160 = vmatprep.subr.mxu0 0.0
    %161 = vmatpush1.msra.mxu0 0.0
    %162 = vmatprep.subr.mxu0 0.0
    %163 = vmatpush1.msra.mxu0 0.0
    %164 = vmatprep.subr.mxu0 0.0
    %165 = vmatpush1.msra.mxu0 0.0
    %166 = vmatprep.subr.mxu0 0.0
    %167 = vmatpush1.msra.mxu0 0.0
    %168 = vmatprep.subr.mxu0 0.0
    %169 = vmatpush1.msra.mxu0 0.0
    %170 = vmatprep.subr.mxu0 0.0
    %171 = vmatpush1.msra.mxu0 0.0
    %172 = vmatprep.subr.mxu0 0.0
    %173 = vmatpush1.msra.mxu0 0.0
    %174 = vmatprep.subr.mxu0 0.0
    %175 = vmatpush1.msra.mxu0 0.0
    %176 = vmatprep.subr.mxu0 0.0
    %177 = vmatpush1.msra.mxu0 0.0
    %178 = vmatprep.subr.mxu0 0.0
    %179 = vmatpush1.msra.mxu0 0.0
    %180 = vmatprep.subr.mxu0 0.0
    %181 = vmatpush1.msra.mxu0 0.0
    %182 = vmatprep.subr.mxu0 0.0
    %183 = vmatpush1.msra.mxu0 0.0
    %184 = vmatprep.subr.mxu0 0.0
    %185 = vmatpush1.msra.mxu0 0.0
    %186 = vmatprep.subr.mxu0 0.0
    %187 = vmatpush1.msra.mxu0 0.0
    %188 = vmatprep.subr.mxu0 0.0
    %189 = vmatpush1.msra.mxu0 0.0
    %190 = vmatprep.subr.mxu0 0.0
    %191 = vmatpush1.msra.mxu0 0.0
    %192 = vmatprep.mubr.f32.mxu0 0.0
    %193 = vmatmul.mubr.f32.gmra.mrb[0].mxu0 %v123
    %v194 = vpop.f32.mrb[0].mxu0
    %v195 = vadd.f32 0.0, %v194
    %v196 = vpop.f32.mrb[0].mxu0
    %197 = vmatprep.mubr.f32.mxu0 0.0
    %198 = vmatmul.mubr.f32.gmra.mrb[0].mxu0 %v126
    %v199 = vpop.f32.mrb[0].mxu0
    %v200 = vadd.f32 0.0, %v199
    %v201 = vpop.f32.mrb[0].mxu0
    %202 = vdwg.mxu0
    %v203 = vmul.f32 %v110, %v195
    %v204 = vmul.f32 %v115, %v200
    %205 = vst [vmem:[#allocation5] sm:$0xff] %v203
    %206 = vst [vmem:[#allocation5 + $0x8] sm:$0xff] %v204
    // Predicated region
    $region22: #{tpu_custom_call.1} parent=1 // pred_check
      _
    $region23: #{tpu_custom_call.1} parent=1 // pred_check_branch
      %208 = sbr.rel (0) target = $region25
    $region24: #{tpu_custom_call.1} parent=1 // pred_region
      %s210 = ssub.s32 256, 256
      %211 = vsyncadd [#allocation4], %s210
      %s212 = sshll.u32 [#allocation5], 4
      %s213 = int_to_ptr.vmem [resolvable:$true] %s212
      %218 = dma.vmem_to_hbm [thread:$0]  %s213, 256, %s4, [#allocation4], 128, 128, 8
    $region25: #{tpu_custom_call.1} parent=1 // pred_fallthru
      _
    // Predicated region
    $region26: #{tpu_custom_call.1} parent=1 // pred_check
      _
    $region27: #{tpu_custom_call.1} parent=1 // pred_check_branch
      %220 = sbr.rel (0) target = $region29
    $region28: #{tpu_custom_call.1} parent=1 // pred_region
      %221 = dma.done [#allocation4], 256
    $region29: #{tpu_custom_call.1} parent=1 // pred_fallthru
      _
    %222 = vsyncpa [#allocation3], 1
    %223 = vsyncpa [#allocation4], 1

</llo_original>
